<compile_context>
chip_gen: v6e
topology: v6e:2x2x1
jax: 0.10.0
libtpu: 0.0.40
codegen_flags: <defaults>
</compile_context>

<pallas_src>
import jax
import jax.numpy as jnp
from jax.experimental import pallas as pl
from jax.experimental.pallas import tpu as pltpu

_LANE = 128


def _ceil8(n):
    return ((n + 7) // 8) * 8


def _concat_attention_kernel(x_ref, ctx_ref, slab_ref, out_ref, w_ref):
    B, T, H = ctx_ref.shape
    H8 = _ceil8(H)
    r_wo = H8                      # rows [r_wo, r_wo+2H)  : wo^T, lane-padded
    r_bias = H8 + _ceil8(2 * H)    # row  r_bias           : [bv | bg | wh | 0]
                                   # row  r_bias + 1       : [bo | 0]

    x = x_ref[...]                                  # (B, H)
    ctx = ctx_ref[...]                              # (B, T, H)

    w_vg = slab_ref[0:H, :]                         # (H, 128)  [wv^T | wg^T | 0]
    w_o = slab_ref[r_wo:r_wo + 2 * H, :]            # (2H, 128) [wo^T | 0]
    bias1 = slab_ref[r_bias:r_bias + 1, :]          # (1, 128)  [bv | bg | wh | 0]
    bias2 = slab_ref[r_bias + 1:r_bias + 2, :]      # (1, 128)  [bo | 0]

    # --- gamma_c and gamma_h in ONE MXU push ------------------------------
    # rows: [context rows (B*T) ; x rows (B)], cols: [wv^T (T) | wg^T (T)].
    stacked = jnp.concatenate([ctx.reshape(B * T, H), x], axis=0)   # (B*T+B, H)
    gamma = jnp.dot(stacked, w_vg,
                    preferred_element_type=jnp.float32) + bias1     # (B*T+B, 128)
    gamma_c = gamma[:B * T, 0:T].reshape(B, T, T)                   # (B, T, T)
    gamma_h = gamma[B * T:, T:2 * T]                                # (B, T)

    s = jnp.tanh(gamma_c + gamma_h[:, None, :])                     # (B, T, T)

    # linear_h: length-T contraction stays on VPU + lane reduce (MXU would be
    # wasted on a (., T) @ (T, 1) sliver). bh is shift-invariant under softmax
    # and therefore dropped (exact modulo rounding).
    wh = bias1[:, 2 * T:3 * T]                                      # (1, T)
    logits = jnp.sum(s * wh[None, :, :], axis=-1)                   # (B, T)

    # stable softmax over time (lane axis); reciprocal goes to the EUP slot.
    m = jnp.max(logits, axis=-1, keepdims=True)
    e = jnp.exp(logits - m)
    w = e * pl.reciprocal(jnp.sum(e, axis=-1, keepdims=True), approx=False)

    # c_t = weights^T @ context: broadcast multiply + sublane reduce over T.
    c_t = jnp.sum(w[:, :, None] * ctx, axis=1)                      # (B, H)

    # output = relu(linear_o([c_t, x])): concat folded into one (B,2H)@(2H,128).
    cx = jnp.concatenate([c_t, x], axis=-1)                         # (B, 2H)
    o = jnp.dot(cx, w_o, preferred_element_type=jnp.float32) + bias2
    out_ref[...] = jnp.maximum(o[:, 0:H], 0.0)
    w_ref[...] = w


def pack_concat_attention_params(params, hidden_size, time_step):
    """One-time packing of all weights/biases into a single VMEM-friendly slab.

    Row layout (lane width 128):
      [0, H)            : [wv^T | wg^T | 0]        (H, 2T padded to 128)
      [ceil8(H), +2H)   : [wo^T | 0]               (2H, H padded to 128)
      bias row 0        : [bv | bg | wh | 0]
      bias row 1        : [bo | 0]
    """
    H, T = hidden_size, time_step
    assert H <= 128, "hidden_size must fit in one lane tile"
    assert 3 * T <= 128, "time_step too large for single-row bias packing"
    assert H % 8 == 0, "hidden_size must be a multiple of 8 for aligned slicing"
    # NOTE: T % 8 == 0 keeps the (B*T,H)->(B,T,T) reshapes layout-free; other
    # values are still correct, just slower.

    H8 = _ceil8(H)
    r_wo = H8
    r_bias = H8 + _ceil8(2 * H)
    rows = r_bias + 8

    slab = jnp.zeros((rows, _LANE), jnp.float32)
    slab = slab.at[0:H, 0:T].set(params["wv"].T)
    slab = slab.at[0:H, T:2 * T].set(params["wg"].T)
    slab = slab.at[r_wo:r_wo + 2 * H, 0:H].set(params["wo"].T)
    slab = slab.at[r_bias, 0:T].set(params["bv"])
    slab = slab.at[r_bias, T:2 * T].set(params["bg"])
    slab = slab.at[r_bias, 2 * T:3 * T].set(params["wh"].reshape(T))
    slab = slab.at[r_bias + 1, 0:H].set(params["bo"])
    # params["bh"] intentionally not packed: softmax shift invariance.
    return slab


def concat_attention_pallas(x, context, slab):
    B, H = x.shape
    _, T, _ = context.shape

    vmem = pl.BlockSpec(memory_space=pltpu.MemorySpace.VMEM)
    out, w = pl.pallas_call(
        _concat_attention_kernel,
        out_shape=(jax.ShapeDtypeStruct((B, H), jnp.float32),
                   jax.ShapeDtypeStruct((B, T), jnp.float32)),
        in_specs=[vmem, vmem, vmem],       # x, context, packed param slab
        out_specs=(vmem, vmem),
    )(x, context, slab)
    return out, w


def concat_attention_ref(x, context, p):
    """Pure-JAX reference matching the PyTorch forward exactly (incl. bh)."""
    gamma_c = context @ p["wv"].T + p["bv"]                       # (B, T, T)
    gamma_h = x @ p["wg"].T + p["bg"]                             # (B, T)
    s = jnp.tanh(gamma_c + gamma_h[:, None, :])                   # (B, T, T)
    logits = jnp.squeeze(s @ p["wh"].T, -1) + p["bh"]             # (B, T)
    w = jax.nn.softmax(logits, axis=1)
    c_t = jnp.einsum("bt,bth->bh", w, context)                    # (B, H)
    out = jax.nn.relu(jnp.concatenate([c_t, x], axis=1) @ p["wo"].T + p["bo"])
    return out, w


def _init_params(key, hidden_size, time_step):
    ks = jax.random.split(key, 8)
    scale = 0.1
    return {
        "wv": scale * jax.random.normal(ks[0], (time_step, hidden_size), jnp.float32),
        "bv": scale * jax.random.normal(ks[1], (time_step,), jnp.float32),
        "wg": scale * jax.random.normal(ks[2], (time_step, hidden_size), jnp.float32),
        "bg": scale * jax.random.normal(ks[3], (time_step,), jnp.float32),
        "wh": scale * jax.random.normal(ks[4], (1, time_step), jnp.float32),
        "bh": scale * jax.random.normal(ks[5], (1,), jnp.float32),
        "wo": scale * jax.random.normal(ks[6], (hidden_size, 2 * hidden_size), jnp.float32),
        "bo": scale * jax.random.normal(ks[7], (hidden_size,), jnp.float32),
    }


if __name__ == "__main__":
    B, H, T = 4, 32, 8   # batch, hidden_size, time_step

    key = jax.random.PRNGKey(0)
    kx, kc, kp = jax.random.split(key, 3)
    x = jax.random.normal(kx, (B, H), jnp.float32)
    context = jax.random.normal(kc, (B, T, H), jnp.float32)
    params = _init_params(kp, H, T)

    # One-time parameter packing (hoisted out of the per-call path).
    slab = jax.block_until_ready(pack_concat_attention_params(params, H, T))

    out, weights = concat_attention_pallas(x, context, slab)
    out = jax.block_until_ready(out)
    weights = jax.block_until_ready(weights)

    out_ref, w_ref = concat_attention_ref(x, context, params)
    assert out.shape == (B, H) and weights.shape == (B, T)
    assert jnp.allclose(weights, w_ref, atol=1e-5, rtol=1e-5)
    assert jnp.allclose(out, out_ref, atol=1e-5, rtol=1e-5)

    print("KERNEL_OK")
</pallas_src>

<mosaic_0001>
module attributes {stable_mosaic.version = 11 : i64} {
  func.func @_concat_attention_kernel(%arg0: memref<4x32xf32, #tpu.memory_space<vmem>>, %arg1: memref<4x8x32xf32, #tpu.memory_space<vmem>>, %arg2: memref<104x128xf32, #tpu.memory_space<vmem>>, %arg3: memref<4x32xf32, #tpu.memory_space<vmem>>, %arg4: memref<4x8xf32, #tpu.memory_space<vmem>>) attributes {dimension_semantics = [], scalar_prefetch = 0 : i64, scratch_operands = 0 : i64, tpu.core_type = #tpu.core_type<tc>} {
    %c0 = arith.constant 0 : index
    %c0_0 = arith.constant 0 : index
    %0 = vector.load %arg0[%c0, %c0_0] : memref<4x32xf32, #tpu.memory_space<vmem>>, vector<4x32xf32>
    %c0_1 = arith.constant 0 : index
    %c0_2 = arith.constant 0 : index
    %c0_3 = arith.constant 0 : index
    %1 = vector.load %arg1[%c0_1, %c0_2, %c0_3] : memref<4x8x32xf32, #tpu.memory_space<vmem>>, vector<4x8x32xf32>
    %c0_4 = arith.constant 0 : index
    %c0_5 = arith.constant 0 : index
    %2 = vector.load %arg2[%c0_4, %c0_5] : memref<104x128xf32, #tpu.memory_space<vmem>>, vector<32x128xf32>
    %c32 = arith.constant 32 : index
    %c0_6 = arith.constant 0 : index
    %3 = vector.load %arg2[%c32, %c0_6] : memref<104x128xf32, #tpu.memory_space<vmem>>, vector<64x128xf32>
    %c96 = arith.constant 96 : index
    %c0_7 = arith.constant 0 : index
    %4 = vector.load %arg2[%c96, %c0_7] : memref<104x128xf32, #tpu.memory_space<vmem>>, vector<1x128xf32>
    %c97 = arith.constant 97 : index
    %c0_8 = arith.constant 0 : index
    %5 = vector.load %arg2[%c97, %c0_8] : memref<104x128xf32, #tpu.memory_space<vmem>>, vector<1x128xf32>
    %6 = vector.shape_cast %1 : vector<4x8x32xf32> to vector<32x32xf32>
    %7 = tpu.concatenate %6, %0 in 0 : vector<32x32xf32>, vector<4x32xf32> -> vector<36x32xf32>
    %cst = arith.constant dense<0.000000e+00> : vector<36x128xf32>
    %8 = tpu.matmul %7, %2, %cst {dimension_numbers = #tpu.dot_dimension_numbers<[1], [0], [0], [1], [0, 0, 1, 1], [], []>} : vector<36x32xf32>, vector<32x128xf32>, vector<36x128xf32> -> vector<36x128xf32>
    %9 = vector.broadcast %4 : vector<1x128xf32> to vector<36x128xf32>
    %10 = arith.addf %8, %9 : vector<36x128xf32>
    %11 = vector.extract_strided_slice %10 {offsets = [0, 0], sizes = [32, 8], strides = [1, 1]} : vector<36x128xf32> to vector<32x8xf32>
    %12 = vector.shape_cast %11 : vector<32x8xf32> to vector<4x8x8xf32>
    %13 = vector.extract_strided_slice %10 {offsets = [32, 8], sizes = [4, 8], strides = [1, 1]} : vector<36x128xf32> to vector<4x8xf32>
    %14 = vector.shape_cast %13 : vector<4x8xf32> to vector<4x1x8xf32>
    %15 = vector.broadcast %14 : vector<4x1x8xf32> to vector<4x8x8xf32>
    %16 = arith.addf %12, %15 : vector<4x8x8xf32>
    %17 = math.tanh %16 : vector<4x8x8xf32>
    %18 = vector.extract_strided_slice %4 {offsets = [0, 16], sizes = [1, 8], strides = [1, 1]} : vector<1x128xf32> to vector<1x8xf32>
    %19 = vector.shape_cast %18 : vector<1x8xf32> to vector<1x1x8xf32>
    %20 = vector.broadcast %19 : vector<1x1x8xf32> to vector<4x8x8xf32>
    %21 = arith.mulf %17, %20 : vector<4x8x8xf32>
    %cst_9 = arith.constant dense<0.000000e+00> : vector<4x8xf32>
    %22 = vector.multi_reduction <add>, %21, %cst_9 [2] : vector<4x8x8xf32> to vector<4x8xf32>
    %cst_10 = arith.constant dense<0xFF800000> : vector<4xf32>
    %23 = vector.multi_reduction <maximumf>, %22, %cst_10 [1] : vector<4x8xf32> to vector<4xf32>
    %24 = vector.shape_cast %23 : vector<4xf32> to vector<4x1xf32>
    %25 = vector.broadcast %24 : vector<4x1xf32> to vector<4x8xf32>
    %26 = arith.subf %22, %25 : vector<4x8xf32>
    %27 = math.exp %26 : vector<4x8xf32>
    %cst_11 = arith.constant dense<0.000000e+00> : vector<4xf32>
    %28 = vector.multi_reduction <add>, %27, %cst_11 [1] : vector<4x8xf32> to vector<4xf32>
    %29 = vector.shape_cast %28 : vector<4xf32> to vector<4x1xf32>
    %30 = tpu.reciprocal %29 : vector<4x1xf32> -> vector<4x1xf32>
    %31 = vector.broadcast %30 : vector<4x1xf32> to vector<4x8xf32>
    %32 = arith.mulf %27, %31 : vector<4x8xf32>
    %33 = vector.shape_cast %32 : vector<4x8xf32> to vector<4x8x1xf32>
    %34 = vector.broadcast %33 : vector<4x8x1xf32> to vector<4x8x32xf32>
    %35 = arith.mulf %34, %1 : vector<4x8x32xf32>
    %cst_12 = arith.constant dense<0.000000e+00> : vector<4x32xf32>
    %36 = vector.multi_reduction <add>, %35, %cst_12 [1] : vector<4x8x32xf32> to vector<4x32xf32>
    %37 = tpu.concatenate %36, %0 in 1 : vector<4x32xf32>, vector<4x32xf32> -> vector<4x64xf32>
    %cst_13 = arith.constant dense<0.000000e+00> : vector<4x128xf32>
    %38 = tpu.matmul %37, %3, %cst_13 {dimension_numbers = #tpu.dot_dimension_numbers<[1], [0], [0], [1], [0, 0, 1, 1], [], []>} : vector<4x64xf32>, vector<64x128xf32>, vector<4x128xf32> -> vector<4x128xf32>
    %39 = vector.broadcast %5 : vector<1x128xf32> to vector<4x128xf32>
    %40 = arith.addf %38, %39 : vector<4x128xf32>
    %41 = vector.extract_strided_slice %40 {offsets = [0, 0], sizes = [4, 32], strides = [1, 1]} : vector<4x128xf32> to vector<4x32xf32>
    %cst_14 = arith.constant 0.000000e+00 : f32
    %42 = vector.broadcast %cst_14 : f32 to vector<4x32xf32>
    %43 = arith.maximumf %41, %42 : vector<4x32xf32>
    %c0_15 = arith.constant 0 : index
    %c0_16 = arith.constant 0 : index
    %44 = vector.load %arg3[%c0_15, %c0_16] : memref<4x32xf32, #tpu.memory_space<vmem>>, vector<4x32xf32>
    tpu.vector_store %arg3[%c0_15, %c0_16], %43 {strides = array<i32>} : memref<4x32xf32, #tpu.memory_space<vmem>>, vector<4x32xf32>,
    %c0_17 = arith.constant 0 : index
    %c0_18 = arith.constant 0 : index
    %45 = vector.load %arg4[%c0_17, %c0_18] : memref<4x8xf32, #tpu.memory_space<vmem>>, vector<4x8xf32>
    tpu.vector_store %arg4[%c0_17, %c0_18], %32 {strides = array<i32>} : memref<4x8xf32, #tpu.memory_space<vmem>>, vector<4x8xf32>,
    return
  }
}

</mosaic_0001>

<llo_original>
// kernel: tpu_custom_call.1
$region0: #{tpu_custom_call.1}
  #allocation0 [shape = 'u32[]', space=smem, size = 0x4, offset = 0x4, fixed_abs, tag = 'smem constant byte address 0x4 - core index']
  #allocation1 [shape = 'u32[144,128]{1,0:T(1,128)}', space=vmem, size = 0x12000, scoped, tag = 'internal scratch']
  %s0 = inlined_call_operand.hbm [shape: f32[4,32], index: 0, kind: input, shape index: {}]
  %s1 = inlined_call_operand.hbm [shape: f32[4,8,32], index: 1, kind: input, shape index: {}]
  %s2 = inlined_call_operand.hbm [shape: f32[104,128], index: 2, kind: input, shape index: {}]
  %s3 = inlined_call_operand.hbm [shape: f32[4,32], index: 3, kind: output, shape index: {0}]
  %s4 = inlined_call_operand.hbm [shape: f32[4,8], index: 4, kind: output, shape index: {1}]
  %5 = xla_tuple %s3, %s4
  %s6 = sld [smem:[#allocation0]]
  $region42: #{tpu_custom_call.1} parent=0
    _
  %s8 = ssub.s32 1, %s6
  %s9 = scalar_select 0, %s8, %s6
  $region1: #{tpu_custom_call.1} parent=0
    #allocation2 [shape = 'u8[2048]{0}', space=vmem, size = 0x800, scoped, tag = 'input window, operand 0, single buffered']
    #allocation3 [shape = 's32[1]{0}', space=sflag, size = 0x4, scoped, tag = 'scoped memory for tpu_custom_call.1']
    #allocation4 [shape = 's32[1]{0}', space=sflag, size = 0x4, scoped, tag = 'scoped memory for tpu_custom_call.1']
    #allocation5 [shape = 'u8[16384]{0}', space=vmem, size = 0x4000, scoped, tag = 'input window, operand 1, single buffered']
    #allocation6 [shape = 's32[1]{0}', space=sflag, size = 0x4, scoped, tag = 'scoped memory for tpu_custom_call.1']
    #allocation7 [shape = 'u8[53248]{0}', space=vmem, size = 0xd000, scoped, tag = 'input window, operand 2, single buffered']
    #allocation8 [shape = 'u8[2048]{0}', space=vmem, size = 0x800, scoped, tag = 'output window, operand 0, single buffered']
    #allocation9 [shape = 'u8[2048]{0}', space=vmem, size = 0x800, scoped, tag = 'output window, operand 1, single buffered']
    #allocation10 [shape = 's32[1]{0}', space=sflag, size = 0x4, scoped, tag = 'scoped memory for tpu_custom_call.1']
    %10 = vsyncpa [#allocation3], 0
    %11 = vsyncpa [#allocation6], 0
    %12 = vsyncpa [#allocation4], 0
    %13 = vsyncpa [#allocation10], 0
    // Predicated region
    $region2: #{tpu_custom_call.1} parent=1 // pred_check
      _
    $region3: #{tpu_custom_call.1} parent=1 // pred_check_branch
      %15 = sbr.rel (0) target = $region5
    $region4: #{tpu_custom_call.1} parent=1 // pred_region
      %s17 = ssub.s32 64, 64
      %18 = vsyncadd [#allocation3], %s17
      %s20 = sshll.u32 [#allocation2], 4
      %s21 = int_to_ptr.vmem [resolvable:$true] %s20
      %23 = dma.hbm_to_vmem [thread:$0]  %s0, 64, %s21, [#allocation3]
    $region5: #{tpu_custom_call.1} parent=1 // pred_fallthru
      _
    // Predicated region
    $region6: #{tpu_custom_call.1} parent=1 // pred_check
      _
    $region7: #{tpu_custom_call.1} parent=1 // pred_check_branch
      %25 = sbr.rel (0) target = $region9
    $region8: #{tpu_custom_call.1} parent=1 // pred_region
      %s27 = ssub.s32 512, 512
      %28 = vsyncadd [#allocation6], %s27
      %s29 = sshll.u32 [#allocation5], 4
      %s30 = int_to_ptr.vmem [resolvable:$true] %s29
      %35 = dma.hbm_to_vmem [thread:$0]  %s1, 512, %s30, [#allocation6], 128, 128, 8
    $region9: #{tpu_custom_call.1} parent=1 // pred_fallthru
      _
    // Predicated region
    $region10: #{tpu_custom_call.1} parent=1 // pred_check
      _
    $region11: #{tpu_custom_call.1} parent=1 // pred_check_branch
      %37 = sbr.rel (0) target = $region13
    $region12: #{tpu_custom_call.1} parent=1 // pred_region
      %s39 = ssub.s32 1664, 1664
      %40 = vsyncadd [#allocation6], %s39
      %s41 = sshll.u32 [#allocation7], 4
      %s42 = int_to_ptr.vmem [resolvable:$true] %s41
      %47 = dma.hbm_to_vmem [thread:$0]  %s2, 1664, %s42, [#allocation6], 128, 128, 8
    $region13: #{tpu_custom_call.1} parent=1 // pred_fallthru
      _
    // Predicated region
    $region14: #{tpu_custom_call.1} parent=1 // pred_check
      _
    $region15: #{tpu_custom_call.1} parent=1 // pred_check_branch
      %49 = sbr.rel (0) target = $region17
    $region16: #{tpu_custom_call.1} parent=1 // pred_region
      %50 = dma.done [#allocation3], 64
    $region17: #{tpu_custom_call.1} parent=1 // pred_fallthru
      _
    // Predicated region
    $region18: #{tpu_custom_call.1} parent=1 // pred_check
      _
    $region19: #{tpu_custom_call.1} parent=1 // pred_check_branch
      %52 = sbr.rel (0) target = $region21
    $region20: #{tpu_custom_call.1} parent=1 // pred_region
      %53 = dma.done [#allocation6], 512
    $region21: #{tpu_custom_call.1} parent=1 // pred_fallthru
      _
    // Predicated region
    $region22: #{tpu_custom_call.1} parent=1 // pred_check
      _
    $region23: #{tpu_custom_call.1} parent=1 // pred_check_branch
      %55 = sbr.rel (0) target = $region25
    $region24: #{tpu_custom_call.1} parent=1 // pred_region
      %56 = dma.done [#allocation6], 1664
    $region25: #{tpu_custom_call.1} parent=1 // pred_fallthru
      _
    %v57 = vld [vmem:[#allocation2] sm:$0xf]
    %v58 = vld [vmem:[#allocation5] sm:$0xff]
    %v59 = vld [vmem:[#allocation5 + $0x8] sm:$0xff]
    %v60 = vld [vmem:[#allocation5 + $0x10] sm:$0xff]
    %v61 = vld [vmem:[#allocation5 + $0x18] sm:$0xff]
    %v62 = vld [vmem:[#allocation7] sm:$0xff]
    %v63 = vld [vmem:[#allocation7 + $0x8] sm:$0xff]
    %v64 = vld [vmem:[#allocation7 + $0x10] sm:$0xff]
    %v65 = vld [vmem:[#allocation7 + $0x18] sm:$0xff]
    %v66 = vld [vmem:[#allocation7 + $0x20] sm:$0xff]
    %v67 = vld [vmem:[#allocation7 + $0x28] sm:$0xff]
    %v68 = vld [vmem:[#allocation7 + $0x30] sm:$0xff]
    %v69 = vld [vmem:[#allocation7 + $0x38] sm:$0xff]
    %v70 = vld [vmem:[#allocation7 + $0x40] sm:$0xff]
    %v71 = vld [vmem:[#allocation7 + $0x48] sm:$0xff]
    %v72 = vld [vmem:[#allocation7 + $0x50] sm:$0xff]
    %v73 = vld [vmem:[#allocation7 + $0x58] sm:$0xff]
    %v74 = vld [vmem:[#allocation7 + $0x60] sm:$0x1]
    %v75 = vld [vmem:[#allocation7 + $0x61] sm:$0x1]
    %v76 = vlaneseq
    %v77 = vshrl.u32 %v76, 7
    %v78 = vsub.s32 0, %v77
    %v79 = vrot.slane %v74, %v78
    %vm80 = vcmask 261120
    %v82 = vsel %vm80, %v58, 0
    %v85 = vsel %vm80, %v59, 0
    %v88 = vsel %vm80, %v60, 0
    %v91 = vsel %vm80, %v61, 0
    %v94 = vsel %vm80, %v57, 0
    %96 = vmatprep.subr.mxu0 0.0
    %97 = vmatpush1.msra.mxu0 0.0
    %98 = vmatprep.subr.mxu0 0.0
    %99 = vmatpush1.msra.mxu0 0.0
    %100 = vmatprep.subr.mxu0 0.0
    %101 = vmatpush1.msra.mxu0 0.0
    %102 = vmatprep.subr.mxu0 0.0
    %103 = vmatpush1.msra.mxu0 0.0
    %104 = vmatprep.subr.mxu0 0.0
    %105 = vmatpush1.msra.mxu0 0.0
    %106 = vmatprep.subr.mxu0 0.0
    %107 = vmatpush1.msra.mxu0 0.0
    %108 = vmatprep.subr.mxu0 0.0
    %109 = vmatpush1.msra.mxu0 0.0
    %110 = vmatprep.subr.mxu0 0.0
    %111 = vmatpush1.msra.mxu0 0.0
    %112 = vmatprep.subr.mxu0 0.0
    %113 = vmatpush1.msra.mxu0 0.0
    %114 = vmatprep.subr.mxu0 0.0
    %115 = vmatpush1.msra.mxu0 0.0
    %116 = vmatprep.subr.mxu0 0.0
    %117 = vmatpush1.msra.mxu0 0.0
    %118 = vmatprep.subr.mxu0 0.0
    %119 = vmatpush1.msra.mxu0 0.0
    %120 = vmatprep.subr.mxu0 0.0
    %121 = vmatpush1.msra.mxu0 %v65
    %122 = vmatprep.subr.mxu0 0.0
    %123 = vmatpush1.msra.mxu0 %v64
    %124 = vmatprep.subr.mxu0 0.0
    %125 = vmatpush1.msra.mxu0 %v63
    %126 = vmatprep.subr.mxu0 0.0
    %127 = vmatpush1.msra.mxu0 %v62
    %128 = vmatprep.subr.mxu0 0.0
    %129 = vmatpush2.msra.mxu0 0.0
    %130 = vmatprep.subr.mxu0 0.0
    %131 = vmatpush2.msra.mxu0 0.0
    %132 = vmatprep.subr.mxu0 0.0
    %133 = vmatpush2.msra.mxu0 0.0
    %134 = vmatprep.subr.mxu0 0.0
    %135 = vmatpush2.msra.mxu0 0.0
    %136 = vmatprep.subr.mxu0 0.0
    %137 = vmatpush2.msra.mxu0 0.0
    %138 = vmatprep.subr.mxu0 0.0
    %139 = vmatpush2.msra.mxu0 0.0
    %140 = vmatprep.subr.mxu0 0.0
    %141 = vmatpush2.msra.mxu0 0.0
    %142 = vmatprep.subr.mxu0 0.0
    %143 = vmatpush2.msra.mxu0 0.0
    %144 = vmatprep.subr.mxu0 0.0
    %145 = vmatpush2.msra.mxu0 0.0
    %146 = vmatprep.subr.mxu0 0.0
    %147 = vmatpush2.msra.mxu0 0.0
    %148 = vmatprep.subr.mxu0 0.0
    %149 = vmatpush2.msra.mxu0 0.0
    %150 = vmatprep.subr.mxu0 0.0
    %151 = vmatpush2.msra.mxu0 0.0
    %152 = vmatprep.subr.mxu0 0.0
    %153 = vmatpush2.msra.mxu0 0.0
    %154 = vmatprep.subr.mxu0 0.0
    %155 = vmatpush2.msra.mxu0 0.0
    %156 = vmatprep.subr.mxu0 0.0
    %157 = vmatpush2.msra.mxu0 0.0
    %158 = vmatprep.subr.mxu0 0.0
    %159 = vmatpush2.msra.mxu0 0.0
    %160 = vmatprep.mubr.f32.mxu0 0.0
    %161 = vmatmul.mubr.f32.gmra.mxu0 %v82
    %v162 = vpop.f32.mrf.mxu0
    %v163 = vadd.f32 %v79, %v162
    %v164 = vpop.f32.mrf.mxu0
    %165 = vmatprep.mubr.f32.mxu0 0.0
    %166 = vmatmul.mubr.f32.gmra.mxu0 %v85
    %v167 = vpop.f32.mrf.mxu0
    %v168 = vadd.f32 %v79, %v167
    %v169 = vpop.f32.mrf.mxu0
    %170 = vmatprep.mubr.f32.mxu0 0.0
    %171 = vmatmul.mubr.f32.gmra.mxu0 %v88
    %v172 = vpop.f32.mrf.mxu0
    %v173 = vadd.f32 %v79, %v172
    %v174 = vpop.f32.mrf.mxu0
    %175 = vmatprep.mubr.f32.mxu0 0.0
    %176 = vmatmul.mubr.f32.gmra.mxu0 %v91
    %v177 = vpop.f32.mrf.mxu0
    %v178 = vadd.f32 %v79, %v177
    %v179 = vpop.f32.mrf.mxu0
    %180 = vmatprep.mubr.f32.mxu0 0.0
    %181 = vmatmul.mubr.f32.gmra.mxu0 %v94
    %v182 = vpop.f32.mrf.mxu0
    %v183 = vadd.f32 %v79, %v182
    %v184 = vpop.f32.mrf.mxu0
    %185 = vdwg.mxu0
    %v188 = vunpack.c.l.s4 1966171168
    %v189 = vunpack.c.0.s8 %v188
    %v190 = vlaneseq
    %v191 = vshrl.u32 %v190, 7
    %v192 = vsub.s32 %v189, %v191
    %v193 = vrot.slane %v183, %v192
    %v194 = vcombine.high %v193, %v193
    %v196 = vunpack.c.l.s4 1966171168
    %v197 = vunpack.c.0.s8 %v196
    %v198 = vlaneseq
    %v199 = vshrl.u32 %v198, 7
    %v200 = vsub.s32 %v197, %v199
    %v201 = vrot.slane %v193, %v200
    %v203 = vunpack.c.l.s4 1966171168
    %v204 = vunpack.c.0.s8 %v203
    %v205 = vlaneseq
    %v206 = vshrl.u32 %v205, 7
    %v207 = vsub.s32 %v204, %v206
    %v208 = vrot.slane %v194, %v207
    %v209 = vcombine.high %v201, %v201
    %v210 = vcombine.high %v208, %v208
    %v211 = vlaneseq
    %v212 = vshrl.u32 %v211, 7
    %v213 = vsub.s32 0, %v212
    %v214 = vrot.slane %v201, %v213
    %v215 = vlaneseq
    %v216 = vshrl.u32 %v215, 7
    %v217 = vsub.s32 0, %v216
    %v218 = vrot.slane %v208, %v217
    %v219 = vlaneseq
    %v220 = vshrl.u32 %v219, 7
    %v221 = vsub.s32 0, %v220
    %v222 = vrot.slane %v209, %v221
    %v223 = vlaneseq
    %v224 = vshrl.u32 %v223, 7
    %v225 = vsub.s32 0, %v224
    %v226 = vrot.slane %v210, %v225
    %227 = vrot.lane.b32.xlu0 %v214, 120
    %v228 = vpop.permute.xlu0 %227
    %229 = vrot.lane.b32.xlu0 %v218, 120
    %v230 = vpop.permute.xlu0 %229
    %231 = vrot.lane.b32.xlu0 %v222, 120
    %v232 = vpop.permute.xlu0 %231
    %233 = vrot.lane.b32.xlu0 %v226, 120
    %v234 = vpop.permute.xlu0 %233
    %v239 = vadd.f32 %v163, %v228
    %v240 = vadd.f32 %v168, %v230
    %v241 = vadd.f32 %v173, %v232
    %v242 = vadd.f32 %v178, %v234
    %v243 = vtanh.pop %v239
    %v244 = vtanh.pop %v240
    %v245 = vtanh.pop %v241
    %v246 = vtanh.pop %v242
    %248 = vrot.lane.b32.xlu0 %v79, 112
    %v249 = vpop.permute.xlu0 %248
    %v251 = vmul.f32 %v243, %v249
    %v252 = vmul.f32 %v244, %v249
    %v253 = vmul.f32 %v245, %v249
    %v254 = vmul.f32 %v246, %v249
    %vm255 = vcmask 64512
    %v256 = vsel %vm255, %v251, 0.0
    %257 = vadd.xlane.f32.xlu0 %v256
    %v258 = vpop.xlane.xlu0 %257
    %v259 = vsel %vm255, %v252, 0.0
    %260 = vadd.xlane.f32.xlu0 %v259
    %v261 = vpop.xlane.xlu0 %260
    %v262 = vsel %vm255, %v253, 0.0
    %263 = vadd.xlane.f32.xlu0 %v262
    %v264 = vpop.xlane.xlu0 %263
    %v265 = vsel %vm255, %v254, 0.0
    %266 = vadd.xlane.f32.xlu0 %v265
    %v267 = vpop.xlane.xlu0 %266
    %v272 = vlaneseq
    %v273 = vand.u32 %v272, 127
    %v274 = vlaneseq
    %v275 = vshrl.u32 %v274, 7
    %v276 = vsub.s32 %v273, %v275
    %v277 = vrot.slane %v258, %v276
    %v278 = vlaneseq
    %v279 = vshrl.u32 %v278, 7
    %v280 = vsub.s32 %v273, %v279
    %v281 = vrot.slane %v261, %v280
    %v282 = vlaneseq
    %v283 = vshrl.u32 %v282, 7
    %v284 = vsub.s32 %v273, %v283
    %v285 = vrot.slane %v264, %v284
    %v286 = vlaneseq
    %v287 = vshrl.u32 %v286, 7
    %v288 = vsub.s32 %v273, %v287
    %v289 = vrot.slane %v267, %v288
    %vm290 = vcmask 1041409
    %v291 = vsel %vm290, %v281, %v277
    %vm292 = vcmask 1042434
    %v293 = vsel %vm292, %v285, %v291
    %vm294 = vcmask 1043459
    %v295 = vsel %vm294, %v289, %v293
    %vm297 = vcmask 60416
    %v298 = vsel %vm297, %v295, -inf
    %299 = vmax.xlane.f32.xlu0 %v298
    %v300 = vpop.xlane.xlu0 %299
    %v302 = vlaneseq
    %v303 = vshrl.u32 %v302, 7
    %v304 = vsub.s32 0, %v303
    %v305 = vrot.slane %v300, %v304
    %v306 = vlaneseq
    %v307 = vshrl.u32 %v306, 7
    %v308 = vsub.s32 1, %v307
    %v309 = vrot.slane %v300, %v308
    %v310 = vlaneseq
    %v311 = vshrl.u32 %v310, 7
    %v312 = vsub.s32 2, %v311
    %v313 = vrot.slane %v300, %v312
    %v314 = vlaneseq
    %v315 = vshrl.u32 %v314, 7
    %v316 = vsub.s32 3, %v315
    %v317 = vrot.slane %v300, %v316
    %v322 = vsub.f32 %v258, %v305
    %v323 = vsub.f32 %v261, %v309
    %v324 = vsub.f32 %v264, %v313
    %v325 = vsub.f32 %v267, %v317
    %v326 = vmul.f32 %v322, 1.442695
    %v327 = vpow.pop %v326
    %v328 = vmul.f32 %v323, 1.442695
    %v329 = vpow.pop %v328
    %v330 = vmul.f32 %v324, 1.442695
    %v331 = vpow.pop %v330
    %v332 = vmul.f32 %v325, 1.442695
    %v333 = vpow.pop %v332
    %338 = vset.pattern.permute.xlu0 0
    %339 = vperm.xlu0 %338, %v327
    %v340 = vpop.permute.xlu0 %339
    %341 = vset.pattern.permute.xlu0 0
    %342 = vperm.xlu0 %341, %v329
    %v343 = vpop.permute.xlu0 %342
    %344 = vset.pattern.permute.xlu0 0
    %345 = vperm.xlu0 %344, %v331
    %v346 = vpop.permute.xlu0 %345
    %347 = vset.pattern.permute.xlu0 0
    %348 = vperm.xlu0 %347, %v333
    %v349 = vpop.permute.xlu0 %348
    %v350 = vlaneseq
    %v351 = vshrl.u32 %v350, 7
    %v352 = vsub.s32 %v273, %v351
    %v353 = vrot.slane %v340, %v352
    %v354 = vlaneseq
    %v355 = vshrl.u32 %v354, 7
    %v356 = vsub.s32 %v273, %v355
    %v357 = vrot.slane %v343, %v356
    %v358 = vlaneseq
    %v359 = vshrl.u32 %v358, 7
    %v360 = vsub.s32 %v273, %v359
    %v361 = vrot.slane %v346, %v360
    %v362 = vlaneseq
    %v363 = vshrl.u32 %v362, 7
    %v364 = vsub.s32 %v273, %v363
    %v365 = vrot.slane %v349, %v364
    %v366 = vsel %vm290, %v357, %v353
    %v367 = vsel %vm292, %v361, %v366
    %v368 = vsel %vm294, %v365, %v367
    %v370 = vsel %vm297, %v368, 0.0
    %371 = vadd.xlane.f32.xlu0 %v370
    %v372 = vpop.xlane.xlu0 %371
    %v373 = vrcp.pop %v372
    %v375 = vlaneseq
    %v376 = vshrl.u32 %v375, 7
    %v377 = vsub.s32 0, %v376
    %v378 = vrot.slane %v373, %v377
    %v379 = vlaneseq
    %v380 = vshrl.u32 %v379, 7
    %v381 = vsub.s32 1, %v380
    %v382 = vrot.slane %v373, %v381
    %v383 = vlaneseq
    %v384 = vshrl.u32 %v383, 7
    %v385 = vsub.s32 2, %v384
    %v386 = vrot.slane %v373, %v385
    %v387 = vlaneseq
    %v388 = vshrl.u32 %v387, 7
    %v389 = vsub.s32 3, %v388
    %v390 = vrot.slane %v373, %v389
    %v395 = vmul.f32 %v327, %v378
    %v396 = vmul.f32 %v329, %v382
    %v397 = vmul.f32 %v331, %v386
    %v398 = vmul.f32 %v333, %v390
    %400 = vset.pattern.permute.xlu0 0
    %401 = vperm.xlu0 %400, %v395
    %v402 = vpop.permute.xlu0 %401
    %405 = vset.pattern.permute.xlu0 0
    %406 = vperm.xlu0 %405, %v396
    %v407 = vpop.permute.xlu0 %406
    %410 = vset.pattern.permute.xlu0 0
    %411 = vperm.xlu0 %410, %v397
    %v412 = vpop.permute.xlu0 %411
    %415 = vset.pattern.permute.xlu0 0
    %416 = vperm.xlu0 %415, %v398
    %v417 = vpop.permute.xlu0 %416
    %v419 = vmul.f32 %v402, %v58
    %v420 = vmul.f32 %v407, %v59
    %v421 = vmul.f32 %v412, %v60
    %v422 = vmul.f32 %v417, %v61
    %v423 = vsel %vm80, %v419, 0.0
    %v424 = vrot.slane %v423, 4
    %v425 = vadd.f32 %v423, %v424
    %v426 = vrot.slane %v425, 2
    %v427 = vadd.f32 %v425, %v426
    %v428 = vrot.slane %v427, 1
    %v429 = vadd.f32 %v427, %v428
    %v430 = vsel %vm80, %v420, 0.0
    %v431 = vrot.slane %v430, 4
    %v432 = vadd.f32 %v430, %v431
    %v433 = vrot.slane %v432, 2
    %v434 = vadd.f32 %v432, %v433
    %v435 = vrot.slane %v434, 1
    %v436 = vadd.f32 %v434, %v435
    %v437 = vsel %vm80, %v421, 0.0
    %v438 = vrot.slane %v437, 4
    %v439 = vadd.f32 %v437, %v438
    %v440 = vrot.slane %v439, 2
    %v441 = vadd.f32 %v439, %v440
    %v442 = vrot.slane %v441, 1
    %v443 = vadd.f32 %v441, %v442
    %v444 = vsel %vm80, %v422, 0.0
    %v445 = vrot.slane %v444, 4
    %v446 = vadd.f32 %v444, %v445
    %v447 = vrot.slane %v446, 2
    %v448 = vadd.f32 %v446, %v447
    %v449 = vrot.slane %v448, 1
    %v450 = vadd.f32 %v448, %v449
    %v455 = vsel %vm290, %v436, %v429
    %v456 = vsel %vm292, %v443, %v455
    %v457 = vsel %vm294, %v450, %v456
    %459 = vrot.lane.b32.xlu0 %v57, 32
    %v460 = vpop.permute.xlu0 %459
    %v462 = vsel %vm80, %v457, %v460
    %v463 = vlaneseq
    %v464 = vshrl.u32 %v463, 7
    %v465 = vsub.s32 0, %v464
    %v466 = vrot.slane %v75, %v465
    %vm467 = vcmask 523264
    %v469 = vsel %vm467, %v462, 0
    %471 = vmatprep.subr.mxu0 0.0
    %472 = vmatpush1.msra.mxu0 0.0
    %473 = vmatprep.subr.mxu0 0.0
    %474 = vmatpush1.msra.mxu0 0.0
    %475 = vmatprep.subr.mxu0 0.0
    %476 = vmatpush1.msra.mxu0 0.0
    %477 = vmatprep.subr.mxu0 0.0
    %478 = vmatpush1.msra.mxu0 0.0
    %479 = vmatprep.subr.mxu0 0.0
    %480 = vmatpush1.msra.mxu0 0.0
    %481 = vmatprep.subr.mxu0 0.0
    %482 = vmatpush1.msra.mxu0 0.0
    %483 = vmatprep.subr.mxu0 0.0
    %484 = vmatpush1.msra.mxu0 0.0
    %485 = vmatprep.subr.mxu0 0.0
    %486 = vmatpush1.msra.mxu0 0.0
    %487 = vmatprep.subr.mxu0 0.0
    %488 = vmatpush1.msra.mxu0 %v73
    %489 = vmatprep.subr.mxu0 0.0
    %490 = vmatpush1.msra.mxu0 %v72
    %491 = vmatprep.subr.mxu0 0.0
    %492 = vmatpush1.msra.mxu0 %v71
    %493 = vmatprep.subr.mxu0 0.0
    %494 = vmatpush1.msra.mxu0 %v70
    %495 = vmatprep.subr.mxu0 0.0
    %496 = vmatpush1.msra.mxu0 %v69
    %497 = vmatprep.subr.mxu0 0.0
    %498 = vmatpush1.msra.mxu0 %v68
    %499 = vmatprep.subr.mxu0 0.0
    %500 = vmatpush1.msra.mxu0 %v67
    %501 = vmatprep.subr.mxu0 0.0
    %502 = vmatpush1.msra.mxu0 %v66
    %503 = vmatprep.subr.mxu0 0.0
    %504 = vmatpush2.msra.mxu0 0.0
    %505 = vmatprep.subr.mxu0 0.0
    %506 = vmatpush2.msra.mxu0 0.0
    %507 = vmatprep.subr.mxu0 0.0
    %508 = vmatpush2.msra.mxu0 0.0
    %509 = vmatprep.subr.mxu0 0.0
    %510 = vmatpush2.msra.mxu0 0.0
    %511 = vmatprep.subr.mxu0 0.0
    %512 = vmatpush2.msra.mxu0 0.0
    %513 = vmatprep.subr.mxu0 0.0
    %514 = vmatpush2.msra.mxu0 0.0
    %515 = vmatprep.subr.mxu0 0.0
    %516 = vmatpush2.msra.mxu0 0.0
    %517 = vmatprep.subr.mxu0 0.0
    %518 = vmatpush2.msra.mxu0 0.0
    %519 = vmatprep.subr.mxu0 0.0
    %520 = vmatpush2.msra.mxu0 0.0
    %521 = vmatprep.subr.mxu0 0.0
    %522 = vmatpush2.msra.mxu0 0.0
    %523 = vmatprep.subr.mxu0 0.0
    %524 = vmatpush2.msra.mxu0 0.0
    %525 = vmatprep.subr.mxu0 0.0
    %526 = vmatpush2.msra.mxu0 0.0
    %527 = vmatprep.subr.mxu0 0.0
    %528 = vmatpush2.msra.mxu0 0.0
    %529 = vmatprep.subr.mxu0 0.0
    %530 = vmatpush2.msra.mxu0 0.0
    %531 = vmatprep.subr.mxu0 0.0
    %532 = vmatpush2.msra.mxu0 0.0
    %533 = vmatprep.subr.mxu0 0.0
    %534 = vmatpush2.msra.mxu0 0.0
    %535 = vmatprep.mubr.f32.mxu0 0.0
    %536 = vmatmul.mubr.f32.gmra.mxu0 %v469
    %v537 = vpop.f32.mrf.mxu0
    %v538 = vadd.f32 %v466, %v537
    %v539 = vpop.f32.mrf.mxu0
    %540 = vdwg.mxu0
    %v541 = vmax.f32 %v538, 0.0
    %vm542 = vcmask 257024
    %543 = vst.msk [vmem:[#allocation8] sm:$0xf] %vm542, %v541
    %v544 = vlaneseq
    %v545 = vshrl.u32 %v544, 7
    %v546 = vsub.s32 %v273, %v545
    %v547 = vrot.slane %v402, %v546
    %v548 = vlaneseq
    %v549 = vshrl.u32 %v548, 7
    %v550 = vsub.s32 %v273, %v549
    %v551 = vrot.slane %v407, %v550
    %v552 = vlaneseq
    %v553 = vshrl.u32 %v552, 7
    %v554 = vsub.s32 %v273, %v553
    %v555 = vrot.slane %v412, %v554
    %v556 = vlaneseq
    %v557 = vshrl.u32 %v556, 7
    %v558 = vsub.s32 %v273, %v557
    %v559 = vrot.slane %v417, %v558
    %v560 = vsel %vm290, %v551, %v547
    %v561 = vsel %vm292, %v555, %v560
    %v562 = vsel %vm294, %v559, %v561
    %564 = vst.msk [vmem:[#allocation9] sm:$0xf] %vm297, %v562
    // Predicated region
    $region26: #{tpu_custom_call.1} parent=1 // pred_check
      _
    $region27: #{tpu_custom_call.1} parent=1 // pred_check_branch
      %566 = sbr.rel (0) target = $region29
    $region28: #{tpu_custom_call.1} parent=1 // pred_region
      %s568 = ssub.s32 64, 64
      %569 = vsyncadd [#allocation4], %s568
      %s571 = sshll.u32 [#allocation8], 4
      %s572 = int_to_ptr.vmem [resolvable:$true] %s571
      %574 = dma.vmem_to_hbm [thread:$0]  %s572, 64, %s3, [#allocation4]
    $region29: #{tpu_custom_call.1} parent=1 // pred_fallthru
      _
    // Predicated region
    $region30: #{tpu_custom_call.1} parent=1 // pred_check
      _
    $region31: #{tpu_custom_call.1} parent=1 // pred_check_branch
      %576 = sbr.rel (0) target = $region33
    $region32: #{tpu_custom_call.1} parent=1 // pred_region
      %s578 = ssub.s32 64, 64
      %579 = vsyncadd [#allocation10], %s578
      %s581 = sshll.u32 [#allocation9], 4
      %s582 = int_to_ptr.vmem [resolvable:$true] %s581
      %584 = dma.vmem_to_hbm [thread:$0]  %s582, 64, %s4, [#allocation10]
    $region33: #{tpu_custom_call.1} parent=1 // pred_fallthru
      _
    // Predicated region
    $region34: #{tpu_custom_call.1} parent=1 // pred_check
      _
    $region35: #{tpu_custom_call.1} parent=1 // pred_check_branch
      %586 = sbr.rel (0) target = $region37
    $region36: #{tpu_custom_call.1} parent=1 // pred_region
      %587 = dma.done [#allocation4], 64
    $region37: #{tpu_custom_call.1} parent=1 // pred_fallthru
      _
    // Predicated region
    $region38: #{tpu_custom_call.1} parent=1 // pred_check
      _
    $region39: #{tpu_custom_call.1} parent=1 // pred_check_branch
      %589 = sbr.rel (0) target = $region41
    $region40: #{tpu_custom_call.1} parent=1 // pred_region
      %590 = dma.done [#allocation10], 64
    $region41: #{tpu_custom_call.1} parent=1 // pred_fallthru
      _
    %591 = vsyncpa [#allocation3], 1
    %592 = vsyncpa [#allocation6], 1
    %593 = vsyncpa [#allocation4], 1
    %594 = vsyncpa [#allocation10], 1

</llo_original>
